<compile_context>
chip_gen: v7x
topology: tpu7x:2x2x1
jax: 0.10.0
libtpu: 0.0.40
codegen_flags: <defaults>
</compile_context>

<pallas_src>
import numpy as np
import jax
import jax.numpy as jnp
from jax.experimental import pallas as pl
from jax.experimental.pallas import tpu as pltpu


# ----------------------------------------------------------------------------
# Plain-numpy construction of the StronglyEntanglingLayers unitary (glue).
# ----------------------------------------------------------------------------
def _kron_all(mats):
    out = mats[0]
    for m in mats[1:]:
        out = np.kron(out, m)
    return out


def _single_qubit_full(g, wire, n):
    mats = [np.eye(2, dtype=np.complex128) for _ in range(n)]
    mats[wire] = g
    return _kron_all(mats)


def _cnot_full(control, target, n):
    dim = 2 ** n
    M = np.zeros((dim, dim), dtype=np.complex128)
    for i in range(dim):
        cbit = (i >> (n - 1 - control)) & 1
        j = i ^ (1 << (n - 1 - target)) if cbit else i
        M[j, i] = 1.0
    return M


def _rz(phi):
    return np.array([[np.exp(-1j * phi / 2), 0.0],
                     [0.0, np.exp(1j * phi / 2)]], dtype=np.complex128)


def _ry(theta):
    c, s = np.cos(theta / 2), np.sin(theta / 2)
    return np.array([[c, -s], [s, c]], dtype=np.complex128)


def _rot(phi, theta, omega):
    # PennyLane qml.Rot(phi, theta, omega) = RZ(omega) RY(theta) RZ(phi)
    return _rz(omega) @ _ry(theta) @ _rz(phi)


def build_entangling_unitary(weights, num_qubits):
    """Unitary of qml.StronglyEntanglingLayers(weights, wires=range(n))."""
    num_layers = weights.shape[0]
    n = num_qubits
    dim = 2 ** n
    U = np.eye(dim, dtype=np.complex128)
    for l in range(num_layers):
        for i in range(n):
            g = _rot(weights[l, i, 0], weights[l, i, 1], weights[l, i, 2])
            U = _single_qubit_full(g, i, n) @ U
        if n > 1:
            r = (l % (n - 1)) + 1
            for i in range(n):
                U = _cnot_full(i, (i + r) % n, n) @ U
    return U


def build_folded_observable(U, num_qubits):
    """M = Re(U^H Z_0 U); wire 0 = MSB of the basis-state index (PennyLane).

    NOTE: taking only the real part is valid *only* because the RY-embedded
    input state is purely real.  If the embedding ever uses RX/RZ (complex
    amplitudes), this fold silently becomes wrong.
    """
    n = num_qubits
    dim = 2 ** n
    zsign = 1.0 - 2.0 * (((np.arange(dim) >> (n - 1)) & 1).astype(np.float64))
    M = np.real(U.conj().T @ (zsign[:, None] * U))
    return M


def build_wire_bits(num_qubits):
    """bits[w, k] = w-th wire's bit of basis index k (wire 0 = MSB), float32."""
    n = num_qubits
    dim = 2 ** n
    bits = np.zeros((n, dim), dtype=np.float32)
    for w in range(n):
        for k in range(dim):
            bits[w, k] = (k >> (n - 1 - w)) & 1
    return bits


def _round_up(v, m):
    return ((v + m - 1) // m) * m


# ----------------------------------------------------------------------------
# Pallas kernel: product state (dim, TB) -> M @ psi0 -> <Z_0> as (1, TB).
# ----------------------------------------------------------------------------
def qnn_kernel(xt_ref, bits_ref, m_ref, out_ref):
    n = bits_ref.shape[0]                     # num qubits (static)
    xt = xt_ref[...]                          # (n_pad, TB) angles, batch on lanes
    bits = bits_ref[...]                      # (n, dim, TB) lane-replicated masks

    c = jnp.cos(xt * 0.5)                     # (n_pad, TB)
    s = jnp.sin(xt * 0.5)                     # (n_pad, TB)
    d = s - c                                 # (n_pad, TB)

    # psi0[k, b] = prod_w ( c_w + bit_w(k) * (s_w - c_w) )
    # Initialize from wire 0 (no ones-splat), one full-size mult+add per wire.
    psi = c[0:1, :] + bits[0] * d[0:1, :]     # (dim, TB)
    for w in range(1, n):                     # n is small & static
        psi = psi * (c[w:w + 1, :] + bits[w] * d[w:w + 1, :])

    # <psi0| M |psi0> per column; single real MXU pass, lane-dense output.
    y = jnp.dot(m_ref[...], psi, preferred_element_type=jnp.float32)  # (dim, TB)
    out_ref[...] = jnp.sum(psi * y, axis=0, keepdims=True)            # (1, TB)


def quantum_neural_net(x, m, bits_base, *, tb=None):
    """x: (B, n) float32 angles. Returns (B,) float32 <Z_0> values."""
    B, n = x.shape
    dim = m.shape[0]
    lanes = 128

    if tb is None:
        # Adaptive lane tile: big enough to amortize the ~0.35us grid-step
        # overhead, small enough that large batches yield >= ~4 tiles so the
        # "parallel" grid axis shards across both TensorCores on v7x.
        tb = min(_round_up(B, lanes), 2048)
        if B > 2 * lanes:
            tb = min(tb, _round_up(pl.cdiv(B, 4), lanes))
        tb = max(tb, lanes)

    num_tiles = pl.cdiv(B, tb)
    b_pad = num_tiles * tb
    n_pad = max(8, _round_up(n, 8))           # aligned 8-sublane x slab

    # Transposed, padded layout: batch on the lane (last) axis.
    xt = jnp.pad(jnp.transpose(x).astype(jnp.float32),
                 ((0, n_pad - n), (0, b_pad - B)))

    # Lane-replicated per-wire bit masks: (n, dim, tb), resident in VMEM.
    bits_rep = jnp.broadcast_to(
        jnp.asarray(bits_base, dtype=jnp.float32)[:, :, None], (n, dim, tb))

    # TODO(synk): for num_qubits >= ~12, tile M's columns over an "arbitrary"
    # K grid axis with a VMEM accumulator (resident M stops fitting v7x VMEM).
    out = pl.pallas_call(
        qnn_kernel,
        out_shape=jax.ShapeDtypeStruct((1, b_pad), jnp.float32),
        grid=(num_tiles,),
        in_specs=[
            pl.BlockSpec((n_pad, tb), lambda i: (0, i)),     # x tile (pipelined)
            pl.BlockSpec((n, dim, tb), lambda i: (0, 0, 0)), # bit masks, resident
            pl.BlockSpec((dim, dim), lambda i: (0, 0)),      # folded M, resident
        ],
        out_specs=pl.BlockSpec((1, tb), lambda i: (0, i)),   # lane-dense output
        compiler_params=pltpu.CompilerParams(
            dimension_semantics=("parallel",),
        ),
    )(xt, bits_rep, m)
    return out[0, :B]


# ----------------------------------------------------------------------------
# Pure-numpy reference for validation.
# ----------------------------------------------------------------------------
def reference_forward(x_np, U, num_qubits):
    n = num_qubits
    dim = 2 ** n
    B = x_np.shape[0]
    out = np.zeros((B,), dtype=np.float64)
    for b in range(B):
        psi0 = np.ones((dim,), dtype=np.float64)
        for k in range(dim):
            amp = 1.0
            for w in range(n):
                bit = (k >> (n - 1 - w)) & 1
                amp *= np.sin(x_np[b, w] / 2) if bit else np.cos(x_np[b, w] / 2)
            psi0[k] = amp
        psi = U @ psi0.astype(np.complex128)
        zsign = np.array([1.0 - 2.0 * ((k >> (n - 1)) & 1) for k in range(dim)])
        out[b] = np.sum(np.abs(psi) ** 2 * zsign)
    return out


if __name__ == "__main__":
    num_qubits = 4       # X_train.shape[1] in the reference script
    num_layers = 2
    batch = 8
    dim = 2 ** num_qubits

    # Deterministic parameters (torch.rand equivalent: uniform [0, 1)).
    key = jax.random.PRNGKey(0)
    kw, kx = jax.random.split(key)
    q_params = jax.random.uniform(kw, (num_layers, num_qubits, 3),
                                  dtype=jnp.float32)
    x = jax.random.uniform(kx, (batch, num_qubits), dtype=jnp.float32,
                           minval=0.0, maxval=np.pi)

    # Numpy glue: fixed entangling unitary, Z_0 folded in, per-wire bit table.
    U = build_entangling_unitary(np.asarray(q_params, dtype=np.float64),
                                 num_qubits)
    M = jnp.asarray(build_folded_observable(U, num_qubits), dtype=jnp.float32)
    bits_base = build_wire_bits(num_qubits)

    out = quantum_neural_net(x, M, bits_base)
    out = jax.block_until_ready(out)

    ref = reference_forward(np.asarray(x, dtype=np.float64), U, num_qubits)
    np.testing.assert_allclose(np.asarray(out), ref, rtol=1e-4, atol=1e-5)

    print("KERNEL_OK")
</pallas_src>

<mosaic_0001>
module attributes {stable_mosaic.version = 11 : i64} {
  func.func @qnn_kernel(%arg0: i32, %arg1: memref<8x128xf32, #tpu.memory_space<vmem>>, %arg2: memref<4x16x128xf32, #tpu.memory_space<vmem>>, %arg3: memref<16x16xf32, #tpu.memory_space<vmem>>, %arg4: memref<1x128xf32, #tpu.memory_space<vmem>>) attributes {dimension_semantics = [#tpu.dimension_semantics<parallel>], iteration_bounds = array<i64: 1>, scalar_prefetch = 0 : i64, scratch_operands = 0 : i64, tpu.core_type = #tpu.core_type<tc>, window_params = [{transform_indices = @transform_0, window_bounds = array<i64: 8, 128>}, {pipeline_mode = #tpu.pipeline_mode<synchronous>, transform_indices = @transform_1, window_bounds = array<i64: 4, 16, 128>}, {pipeline_mode = #tpu.pipeline_mode<synchronous>, transform_indices = @transform_2, window_bounds = array<i64: 16, 16>}, {transform_indices = @transform_3, window_bounds = array<i64: 1, 128>}]} {
    %c0 = arith.constant 0 : index
    %c0_0 = arith.constant 0 : index
    %0 = vector.load %arg1[%c0, %c0_0] : memref<8x128xf32, #tpu.memory_space<vmem>>, vector<8x128xf32>
    %c0_1 = arith.constant 0 : index
    %c0_2 = arith.constant 0 : index
    %c0_3 = arith.constant 0 : index
    %1 = vector.load %arg2[%c0_1, %c0_2, %c0_3] : memref<4x16x128xf32, #tpu.memory_space<vmem>>, vector<4x16x128xf32>
    %cst = arith.constant 5.000000e-01 : f32
    %2 = vector.broadcast %cst : f32 to vector<8x128xf32>
    %3 = arith.mulf %0, %2 : vector<8x128xf32>
    %4 = math.cos %3 : vector<8x128xf32>
    %cst_4 = arith.constant 5.000000e-01 : f32
    %5 = vector.broadcast %cst_4 : f32 to vector<8x128xf32>
    %6 = arith.mulf %0, %5 : vector<8x128xf32>
    %7 = math.sin %6 : vector<8x128xf32>
    %8 = arith.subf %7, %4 : vector<8x128xf32>
    %9 = vector.extract_strided_slice %4 {offsets = [0, 0], sizes = [1, 128], strides = [1, 1]} : vector<8x128xf32> to vector<1x128xf32>
    %10 = vector.extract_strided_slice %1 {offsets = [0, 0, 0], sizes = [1, 16, 128], strides = [1, 1, 1]} : vector<4x16x128xf32> to vector<1x16x128xf32>
    %11 = vector.shape_cast %10 : vector<1x16x128xf32> to vector<16x128xf32>
    %12 = vector.extract_strided_slice %8 {offsets = [0, 0], sizes = [1, 128], strides = [1, 1]} : vector<8x128xf32> to vector<1x128xf32>
    %13 = vector.broadcast %12 : vector<1x128xf32> to vector<16x128xf32>
    %14 = arith.mulf %11, %13 : vector<16x128xf32>
    %15 = vector.broadcast %9 : vector<1x128xf32> to vector<16x128xf32>
    %16 = arith.addf %15, %14 : vector<16x128xf32>
    %17 = vector.extract_strided_slice %4 {offsets = [1, 0], sizes = [1, 128], strides = [1, 1]} : vector<8x128xf32> to vector<1x128xf32>
    %18 = vector.extract_strided_slice %1 {offsets = [1, 0, 0], sizes = [1, 16, 128], strides = [1, 1, 1]} : vector<4x16x128xf32> to vector<1x16x128xf32>
    %19 = vector.shape_cast %18 : vector<1x16x128xf32> to vector<16x128xf32>
    %20 = vector.extract_strided_slice %8 {offsets = [1, 0], sizes = [1, 128], strides = [1, 1]} : vector<8x128xf32> to vector<1x128xf32>
    %21 = vector.broadcast %20 : vector<1x128xf32> to vector<16x128xf32>
    %22 = arith.mulf %19, %21 : vector<16x128xf32>
    %23 = vector.broadcast %17 : vector<1x128xf32> to vector<16x128xf32>
    %24 = arith.addf %23, %22 : vector<16x128xf32>
    %25 = arith.mulf %16, %24 : vector<16x128xf32>
    %26 = vector.extract_strided_slice %4 {offsets = [2, 0], sizes = [1, 128], strides = [1, 1]} : vector<8x128xf32> to vector<1x128xf32>
    %27 = vector.extract_strided_slice %1 {offsets = [2, 0, 0], sizes = [1, 16, 128], strides = [1, 1, 1]} : vector<4x16x128xf32> to vector<1x16x128xf32>
    %28 = vector.shape_cast %27 : vector<1x16x128xf32> to vector<16x128xf32>
    %29 = vector.extract_strided_slice %8 {offsets = [2, 0], sizes = [1, 128], strides = [1, 1]} : vector<8x128xf32> to vector<1x128xf32>
    %30 = vector.broadcast %29 : vector<1x128xf32> to vector<16x128xf32>
    %31 = arith.mulf %28, %30 : vector<16x128xf32>
    %32 = vector.broadcast %26 : vector<1x128xf32> to vector<16x128xf32>
    %33 = arith.addf %32, %31 : vector<16x128xf32>
    %34 = arith.mulf %25, %33 : vector<16x128xf32>
    %35 = vector.extract_strided_slice %4 {offsets = [3, 0], sizes = [1, 128], strides = [1, 1]} : vector<8x128xf32> to vector<1x128xf32>
    %36 = vector.extract_strided_slice %1 {offsets = [3, 0, 0], sizes = [1, 16, 128], strides = [1, 1, 1]} : vector<4x16x128xf32> to vector<1x16x128xf32>
    %37 = vector.shape_cast %36 : vector<1x16x128xf32> to vector<16x128xf32>
    %38 = vector.extract_strided_slice %8 {offsets = [3, 0], sizes = [1, 128], strides = [1, 1]} : vector<8x128xf32> to vector<1x128xf32>
    %39 = vector.broadcast %38 : vector<1x128xf32> to vector<16x128xf32>
    %40 = arith.mulf %37, %39 : vector<16x128xf32>
    %41 = vector.broadcast %35 : vector<1x128xf32> to vector<16x128xf32>
    %42 = arith.addf %41, %40 : vector<16x128xf32>
    %43 = arith.mulf %34, %42 : vector<16x128xf32>
    %c0_5 = arith.constant 0 : index
    %c0_6 = arith.constant 0 : index
    %44 = vector.load %arg3[%c0_5, %c0_6] : memref<16x16xf32, #tpu.memory_space<vmem>>, vector<16x16xf32>
    %cst_7 = arith.constant dense<0.000000e+00> : vector<16x128xf32>
    %45 = tpu.matmul %44, %43, %cst_7 {dimension_numbers = #tpu.dot_dimension_numbers<[1], [0], [0], [1], [0, 0, 1, 1], [], []>} : vector<16x16xf32>, vector<16x128xf32>, vector<16x128xf32> -> vector<16x128xf32>
    %46 = arith.mulf %43, %45 : vector<16x128xf32>
    %cst_8 = arith.constant dense<0.000000e+00> : vector<128xf32>
    %47 = vector.multi_reduction <add>, %46, %cst_8 [0] : vector<16x128xf32> to vector<128xf32>
    %48 = vector.shape_cast %47 : vector<128xf32> to vector<1x128xf32>
    %c0_9 = arith.constant 0 : index
    %c0_10 = arith.constant 0 : index
    %49 = vector.load %arg4[%c0_9, %c0_10] : memref<1x128xf32, #tpu.memory_space<vmem>>, vector<1x128xf32>
    tpu.vector_store %arg4[%c0_9, %c0_10], %48 {strides = array<i32>} : memref<1x128xf32, #tpu.memory_space<vmem>>, vector<1x128xf32>,
    return
  }
  func.func @transform_0(%arg0: i32) -> (i32, i32) {
    %c0_i32 = arith.constant 0 : i32
    %c0_i32_0 = arith.constant 0 : i32
    return %c0_i32, %arg0 : i32, i32
  }
  func.func @transform_1(%arg0: i32) -> (i32, i32, i32) {
    %c0_i32 = arith.constant 0 : i32
    %c0_i32_0 = arith.constant 0 : i32
    %c0_i32_1 = arith.constant 0 : i32
    %c0_i32_2 = arith.constant 0 : i32
    return %c0_i32, %c0_i32_0, %c0_i32_1 : i32, i32, i32
  }
  func.func @transform_2(%arg0: i32) -> (i32, i32) {
    %c0_i32 = arith.constant 0 : i32
    %c0_i32_0 = arith.constant 0 : i32
    %c0_i32_1 = arith.constant 0 : i32
    return %c0_i32, %c0_i32_0 : i32, i32
  }
  func.func @transform_3(%arg0: i32) -> (i32, i32) {
    %c0_i32 = arith.constant 0 : i32
    %c0_i32_0 = arith.constant 0 : i32
    return %c0_i32, %arg0 : i32, i32
  }
}

</mosaic_0001>

<llo_original>
// kernel: tpu_custom_call.1
$region0: #{tpu_custom_call.1}
  #allocation0 [shape = 'u32[]', space=smem, size = 0x4, offset = 0x4, fixed_abs, tag = 'smem constant byte address 0x4 - core index']
  #allocation1 [shape = 'u32[144,128]{1,0:T(1,128)}', space=vmem, size = 0x12000, scoped, tag = 'internal scratch']
  %s0 = inlined_call_operand.hbm [shape: f32[8,128], index: 0, kind: input, shape index: {}]
  %s1 = inlined_call_operand.hbm [shape: f32[4,16,128], index: 1, kind: input, shape index: {}]
  %s2 = inlined_call_operand.hbm [shape: f32[16,16], index: 2, kind: input, shape index: {}]
  %s3 = inlined_call_operand.hbm [shape: f32[1,128], index: 3, kind: output, shape index: {}]
  %s4 = sld [smem:[#allocation0]]
  $region34: #{tpu_custom_call.1} parent=0
    _
  %s6 = ssub.s32 1, %s4
  %s7 = scalar_select 0, %s6, %s4
  $region1: #{tpu_custom_call.1} parent=0
    #allocation2 [shape = 'u8[4096]{0}', space=vmem, size = 0x1000, scoped, tag = 'input window, operand 0, single buffered']
    #allocation3 [shape = 's32[1]{0}', space=sflag, size = 0x4, scoped, tag = 'scoped memory for tpu_custom_call.1']
    #allocation4 [shape = 's32[1]{0}', space=sflag, size = 0x4, scoped, tag = 'scoped memory for tpu_custom_call.1']
    #allocation5 [shape = 'u8[32768]{0}', space=vmem, size = 0x8000, scoped, tag = 'input window, operand 1, single buffered']
    #allocation6 [shape = 's32[1]{0}', space=sflag, size = 0x4, scoped, tag = 'scoped memory for tpu_custom_call.1']
    #allocation7 [shape = 'u8[8192]{0}', space=vmem, size = 0x2000, scoped, tag = 'input window, operand 2, single buffered']
    #allocation8 [shape = 'u8[512]{0}', space=vmem, size = 0x400, scoped, tag = 'output window, operand 0, single buffered']
    %8 = vsyncpa [#allocation3], 0
    %9 = vsyncpa [#allocation6], 0
    %10 = vsyncpa [#allocation4], 0
    // Predicated region
    $region2: #{tpu_custom_call.1} parent=1 // pred_check
      _
    $region3: #{tpu_custom_call.1} parent=1 // pred_check_branch
      %12 = sbr.rel (0) target = $region5
    $region4: #{tpu_custom_call.1} parent=1 // pred_region
      %s14 = ssub.s32 128, 128
      %15 = vsyncadd [#allocation3], %s14
      %s17 = sshll.u32 [#allocation2], 4
      %s18 = int_to_ptr.vmem [resolvable:$true] %s17
      %20 = dma.hbm_to_vmem [thread:$0]  %s0, 128, %s18, [#allocation3]
    $region5: #{tpu_custom_call.1} parent=1 // pred_fallthru
      _
    // Predicated region
    $region6: #{tpu_custom_call.1} parent=1 // pred_check
      _
    $region7: #{tpu_custom_call.1} parent=1 // pred_check_branch
      %22 = sbr.rel (0) target = $region9
    $region8: #{tpu_custom_call.1} parent=1 // pred_region
      %s24 = ssub.s32 1024, 1024
      %25 = vsyncadd [#allocation6], %s24
      %s26 = sshll.u32 [#allocation5], 4
      %s27 = int_to_ptr.vmem [resolvable:$true] %s26
      %32 = dma.hbm_to_vmem [thread:$0]  %s1, 1024, %s27, [#allocation6], 128, 128, 8
    $region9: #{tpu_custom_call.1} parent=1 // pred_fallthru
      _
    // Predicated region
    $region10: #{tpu_custom_call.1} parent=1 // pred_check
      _
    $region11: #{tpu_custom_call.1} parent=1 // pred_check_branch
      %34 = sbr.rel (0) target = $region13
    $region12: #{tpu_custom_call.1} parent=1 // pred_region
      %s36 = ssub.s32 256, 256
      %37 = vsyncadd [#allocation6], %s36
      %s38 = sshll.u32 [#allocation7], 4
      %s39 = int_to_ptr.vmem [resolvable:$true] %s38
      %44 = dma.hbm_to_vmem [thread:$0]  %s2, 256, %s39, [#allocation6], 128, 128, 8
    $region13: #{tpu_custom_call.1} parent=1 // pred_fallthru
      _
    // Predicated region
    $region14: #{tpu_custom_call.1} parent=1 // pred_check
      _
    $region15: #{tpu_custom_call.1} parent=1 // pred_check_branch
      %46 = sbr.rel (0) target = $region17
    $region16: #{tpu_custom_call.1} parent=1 // pred_region
      %47 = dma.done [#allocation3], 128
    $region17: #{tpu_custom_call.1} parent=1 // pred_fallthru
      _
    // Predicated region
    $region18: #{tpu_custom_call.1} parent=1 // pred_check
      _
    $region19: #{tpu_custom_call.1} parent=1 // pred_check_branch
      %49 = sbr.rel (0) target = $region21
    $region20: #{tpu_custom_call.1} parent=1 // pred_region
      %50 = dma.done [#allocation6], 1024
    $region21: #{tpu_custom_call.1} parent=1 // pred_fallthru
      _
    // Predicated region
    $region22: #{tpu_custom_call.1} parent=1 // pred_check
      _
    $region23: #{tpu_custom_call.1} parent=1 // pred_check_branch
      %52 = sbr.rel (0) target = $region25
    $region24: #{tpu_custom_call.1} parent=1 // pred_region
      %53 = dma.done [#allocation6], 256
    $region25: #{tpu_custom_call.1} parent=1 // pred_fallthru
      _
    %v54 = vld [vmem:[#allocation2] sm:$0xff]
    %v55 = vld [vmem:[#allocation5] sm:$0xff]
    %v56 = vld [vmem:[#allocation5 + $0x8] sm:$0xff]
    %v57 = vld [vmem:[#allocation5 + $0x10] sm:$0xff]
    %v58 = vld [vmem:[#allocation5 + $0x18] sm:$0xff]
    %v59 = vld [vmem:[#allocation5 + $0x20] sm:$0xff]
    %v60 = vld [vmem:[#allocation5 + $0x28] sm:$0xff]
    %v61 = vld [vmem:[#allocation5 + $0x30] sm:$0xff]
    %v62 = vld [vmem:[#allocation5 + $0x38] sm:$0xff]
    %v63 = vmul.f32 %v54, 0.5
    %v64 = vand.u32 2147483647, %v63
    %vm65 = vcmp.le.f32.partialorder %v64, 0.7853982
    %vm66 = vcmp.lt.s32.totalorder %v63, 0
    %v67 = vand.u32 %v63, 2139095040
    %v68 = vshrl.u32 %v67, 23
    %v69 = vsub.s32 %v68, 127
    %v70 = vand.u32 2147483647, %v63
    %v71 = vand.u32 %v70, 8388607
    %v72 = vor.u32 %v71, 8388608
    %v73 = vsub.s32 0, %v72
    %v74 = vadd.s32 %v69, 1
    %vm75 = vcmp.gt.s32.totalorder %v74, 0
    %v76 = vsel %vm75, %v74, 0
    %v77 = vshrl.u32 %v76, 5
    %v78 = vand.u32 %v76, 31
    %v79 = vsub.s32 32, %v78
    %v80 = vshrl.u32 683565275, %v79
    %v81 = vshll.u32 683565275, %v78
    %v82 = vshrl.u32 2475754826, %v79
    %v83 = vor.u32 %v81, %v82
    %v84 = vshll.u32 2475754826, %v78
    %v85 = vshrl.u32 2131351028, %v79
    %v86 = vor.u32 %v84, %v85
    %v87 = vshll.u32 2131351028, %v78
    %v88 = vshrl.u32 2102212464, %v79
    %v89 = vor.u32 %v87, %v88
    %v90 = vshll.u32 2102212464, %v78
    %v91 = vshrl.u32 920167782, %v79
    %v92 = vor.u32 %v90, %v91
    %v93 = vshll.u32 920167782, %v78
    %v94 = vshrl.u32 1326507024, %v79
    %v95 = vor.u32 %v93, %v94
    %vm96 = vcmp.lt.s32.totalorder %v77, 1
    %vm97 = vcmp.lt.s32.totalorder %v77, 2
    %vm98 = vcmp.lt.s32.totalorder %v77, 3
    %vm99 = vcmp.lt.s32.totalorder %v77, 4
    %v100 = vsel %vm96, %v80, %v83
    %v101 = vsel %vm99, %v89, 2102212464
    %v102 = vsel %vm98, %v86, %v101
    %v103 = vsel %vm97, %v100, %v102
    %v104 = vsel %vm96, %v83, %v86
    %v105 = vsel %vm99, %v92, 920167782
    %v106 = vsel %vm98, %v89, %v105
    %v107 = vsel %vm97, %v104, %v106
    %v108 = vsel %vm96, %v86, %v89
    %v109 = vsel %vm99, %v95, 1326507024
    %v110 = vsel %vm98, %v92, %v109
    %v111 = vsel %vm97, %v108, %v110
    %v112 = vshll.u32 %v72, 8
    %v113 = vmul.u32.u64.compose %v112, %v111
    %v114 = vextract.low.u32 %v113
    %v115 = vextract.high.u32 %v113
    %v116 = vmul.u32.u64.compose %v112, %v107
    %v117 = vextract.low.u32 %v116
    %v118 = vextract.high.u32 %v116
    %v119 = vmul.u32 %v112, %v103
    %v120 = vadd.s32 %v115, %v117
    %vm121 = vc.u32 %v115, %v117
    %v122 = vadd.s32 %v118, 1
    %v123 = vsel %vm121, %v122, %v118
    %v124 = vadd.s32 %v119, %v123
    %v125 = vadd.s32 %v124, 536870912
    %v126 = vshrl.u32 %v125, 30
    %v127 = vshll.u32 %v126, 30
    %v128 = vsub.s32 %v124, %v127
    %vm129 = vcmp.lt.s32.totalorder %v128, 0
    %v130 = vsub.s32 0, %v128
    %v131 = vsel %vm129, %v130, %v128
    %v132 = vclz %v131
    %v133 = vsub.s32 %v132, 2
    %vm134 = vcmp.gt.s32.totalorder 0, %v133
    %v135 = vsel %vm134, 0, %v133
    %v136 = vsub.s32 32, %v135
    %v137 = vshll.u32 %v128, %v135
    %v138 = vshrl.u32 %v120, %v136
    %v139 = vor.u32 %v137, %v138
    %v140 = vsub.s32 4294967266, %v135
    %v141 = vadd.s32 %v140, 127
    %v142 = vshll.u32 %v141, 23
    %v143 = vor.u32 4788187, %v142
    %v144 = vand.u32 2147483647, %v143
    %v146 = vcvt.s32.f32 %v139
    %v147 = vmul.f32 %v146, %v144
    %v148 = vxor.u32 %v147, 2147483648
    %v149 = vsel %vm66, %v148, %v147
    %v150 = vsub.s32 4, %v126
    %v151 = vsel %vm66, %v150, %v126
    %v152 = vsel %vm65, %v63, %v149
    %v153 = vsel %vm65, 0, %v151
    %v154 = vcosq.f32.pop %v152
    %v155 = vsinq.f32.pop %v152
    %vm156 = vweird.f32 %v63
    %v157 = vand.u32 %v153, 3
    %vm158 = vcmp.lt.s32.totalorder %v157, 2
    %vm159 = vcmp.eq.s32.totalorder %v157, 0
    %v160 = vxor.u32 %v155, 2147483648
    %v161 = vsel %vm159, %v154, %v160
    %vm162 = vcmp.eq.s32.totalorder %v157, 2
    %v163 = vxor.u32 %v154, 2147483648
    %v164 = vsel %vm162, %v163, %v155
    %v165 = vsel %vm158, %v161, %v164
    %v166 = vsel %vm156, nan, %v165
    %v167 = vand.u32 2147483647, %v63
    %vm168 = vcmp.le.f32.partialorder %v167, 0.7853982
    %vm169 = vcmp.lt.s32.totalorder %v63, 0
    %v170 = vand.u32 %v63, 2139095040
    %v171 = vshrl.u32 %v170, 23
    %v172 = vsub.s32 %v171, 127
    %v173 = vand.u32 2147483647, %v63
    %v174 = vand.u32 %v173, 8388607
    %v175 = vor.u32 %v174, 8388608
    %v176 = vsub.s32 0, %v175
    %v177 = vadd.s32 %v172, 1
    %vm178 = vcmp.gt.s32.totalorder %v177, 0
    %v179 = vsel %vm178, %v177, 0
    %v180 = vshrl.u32 %v179, 5
    %v181 = vand.u32 %v179, 31
    %v182 = vsub.s32 32, %v181
    %v183 = vshrl.u32 683565275, %v182
    %v184 = vshll.u32 683565275, %v181
    %v185 = vshrl.u32 2475754826, %v182
    %v186 = vor.u32 %v184, %v185
    %v187 = vshll.u32 2475754826, %v181
    %v188 = vshrl.u32 2131351028, %v182
    %v189 = vor.u32 %v187, %v188
    %v190 = vshll.u32 2131351028, %v181
    %v191 = vshrl.u32 2102212464, %v182
    %v192 = vor.u32 %v190, %v191
    %v193 = vshll.u32 2102212464, %v181
    %v194 = vshrl.u32 920167782, %v182
    %v195 = vor.u32 %v193, %v194
    %v196 = vshll.u32 920167782, %v181
    %v197 = vshrl.u32 1326507024, %v182
    %v198 = vor.u32 %v196, %v197
    %vm199 = vcmp.lt.s32.totalorder %v180, 1
    %vm200 = vcmp.lt.s32.totalorder %v180, 2
    %vm201 = vcmp.lt.s32.totalorder %v180, 3
    %vm202 = vcmp.lt.s32.totalorder %v180, 4
    %v203 = vsel %vm199, %v183, %v186
    %v204 = vsel %vm202, %v192, 2102212464
    %v205 = vsel %vm201, %v189, %v204
    %v206 = vsel %vm200, %v203, %v205
    %v207 = vsel %vm199, %v186, %v189
    %v208 = vsel %vm202, %v195, 920167782
    %v209 = vsel %vm201, %v192, %v208
    %v210 = vsel %vm200, %v207, %v209
    %v211 = vsel %vm199, %v189, %v192
    %v212 = vsel %vm202, %v198, 1326507024
    %v213 = vsel %vm201, %v195, %v212
    %v214 = vsel %vm200, %v211, %v213
    %v215 = vshll.u32 %v175, 8
    %v216 = vmul.u32.u64.compose %v215, %v214
    %v217 = vextract.low.u32 %v216
    %v218 = vextract.high.u32 %v216
    %v219 = vmul.u32.u64.compose %v215, %v210
    %v220 = vextract.low.u32 %v219
    %v221 = vextract.high.u32 %v219
    %v222 = vmul.u32 %v215, %v206
    %v223 = vadd.s32 %v218, %v220
    %vm224 = vc.u32 %v218, %v220
    %v225 = vadd.s32 %v221, 1
    %v226 = vsel %vm224, %v225, %v221
    %v227 = vadd.s32 %v222, %v226
    %v228 = vadd.s32 %v227, 536870912
    %v229 = vshrl.u32 %v228, 30
    %v230 = vshll.u32 %v229, 30
    %v231 = vsub.s32 %v227, %v230
    %vm232 = vcmp.lt.s32.totalorder %v231, 0
    %v233 = vsub.s32 0, %v231
    %v234 = vsel %vm232, %v233, %v231
    %v235 = vclz %v234
    %v236 = vsub.s32 %v235, 2
    %vm237 = vcmp.gt.s32.totalorder 0, %v236
    %v238 = vsel %vm237, 0, %v236
    %v239 = vsub.s32 32, %v238
    %v240 = vshll.u32 %v231, %v238
    %v241 = vshrl.u32 %v223, %v239
    %v242 = vor.u32 %v240, %v241
    %v243 = vsub.s32 4294967266, %v238
    %v244 = vadd.s32 %v243, 127
    %v245 = vshll.u32 %v244, 23
    %v246 = vor.u32 4788187, %v245
    %v247 = vand.u32 2147483647, %v246
    %v249 = vcvt.s32.f32 %v242
    %v250 = vmul.f32 %v249, %v247
    %v251 = vxor.u32 %v250, 2147483648
    %v252 = vsel %vm169, %v251, %v250
    %v253 = vsub.s32 4, %v229
    %v254 = vsel %vm169, %v253, %v229
    %v255 = vsel %vm168, %v63, %v252
    %v256 = vsel %vm168, 0, %v254
    %v257 = vcosq.f32.pop %v255
    %v258 = vsinq.f32.pop %v255
    %vm259 = vweird.f32 %v63
    %v260 = vadd.s32 %v256, 3
    %v261 = vand.u32 %v260, 3
    %vm262 = vcmp.lt.s32.totalorder %v261, 2
    %vm263 = vcmp.eq.s32.totalorder %v261, 0
    %v264 = vxor.u32 %v258, 2147483648
    %v265 = vsel %vm263, %v257, %v264
    %vm266 = vcmp.eq.s32.totalorder %v261, 2
    %v267 = vxor.u32 %v257, 2147483648
    %v268 = vsel %vm266, %v267, %v258
    %v269 = vsel %vm262, %v265, %v268
    %v270 = vsel %vm259, nan, %v269
    %v271 = vsub.f32 %v270, %v166
    %v272 = vlaneseq
    %v273 = vshrl.u32 %v272, 7
    %v274 = vsub.s32 0, %v273
    %v275 = vrot.slane %v271, %v274
    %v276 = vmul.f32 %v55, %v275
    %v277 = vmul.f32 %v56, %v275
    %v278 = vlaneseq
    %v279 = vshrl.u32 %v278, 7
    %v280 = vsub.s32 0, %v279
    %v281 = vrot.slane %v166, %v280
    %v282 = vadd.f32 %v281, %v276
    %v283 = vadd.f32 %v281, %v277
    %v284 = vlaneseq
    %v285 = vshrl.u32 %v284, 7
    %v286 = vsub.s32 1, %v285
    %v287 = vrot.slane %v271, %v286
    %v288 = vmul.f32 %v57, %v287
    %v289 = vmul.f32 %v58, %v287
    %v290 = vlaneseq
    %v291 = vshrl.u32 %v290, 7
    %v292 = vsub.s32 1, %v291
    %v293 = vrot.slane %v166, %v292
    %v294 = vadd.f32 %v293, %v288
    %v295 = vadd.f32 %v293, %v289
    %v296 = vmul.f32 %v282, %v294
    %v297 = vmul.f32 %v283, %v295
    %v298 = vlaneseq
    %v299 = vshrl.u32 %v298, 7
    %v300 = vsub.s32 2, %v299
    %v301 = vrot.slane %v271, %v300
    %v302 = vmul.f32 %v59, %v301
    %v303 = vmul.f32 %v60, %v301
    %v304 = vlaneseq
    %v305 = vshrl.u32 %v304, 7
    %v306 = vsub.s32 2, %v305
    %v307 = vrot.slane %v166, %v306
    %v308 = vadd.f32 %v307, %v302
    %v309 = vadd.f32 %v307, %v303
    %v310 = vmul.f32 %v296, %v308
    %v311 = vmul.f32 %v297, %v309
    %v312 = vlaneseq
    %v313 = vshrl.u32 %v312, 7
    %v314 = vsub.s32 3, %v313
    %v315 = vrot.slane %v271, %v314
    %v316 = vmul.f32 %v61, %v315
    %v317 = vmul.f32 %v62, %v315
    %v318 = vlaneseq
    %v319 = vshrl.u32 %v318, 7
    %v320 = vsub.s32 3, %v319
    %v321 = vrot.slane %v166, %v320
    %v322 = vadd.f32 %v321, %v316
    %v323 = vadd.f32 %v321, %v317
    %v324 = vmul.f32 %v310, %v322
    %v325 = vmul.f32 %v311, %v323
    %v326 = vld [vmem:[#allocation7] sm:$0xff]
    %v327 = vld [vmem:[#allocation7 + $0x8] sm:$0xff]
    %vm328 = vcmask 130048
    %v330 = vsel %vm328, %v326, 0
    %v333 = vsel %vm328, %v327, 0
    %335 = vmatprep.subr.mxu0 0.0
    %336 = vmatpush1.msra.mxu0 %v324
    %337 = vmatprep.subr.mxu0 0.0
    %338 = vmatpush1.msra.mxu0 %v325
    %339 = vmatprep.subr.mxu0 0.0
    %340 = vmatpush1.msra.mxu0 0.0
    %341 = vmatprep.subr.mxu0 0.0
    %342 = vmatpush1.msra.mxu0 0.0
    %343 = vmatprep.subr.mxu0 0.0
    %344 = vmatpush1.msra.mxu0 0.0
    %345 = vmatprep.subr.mxu0 0.0
    %346 = vmatpush1.msra.mxu0 0.0
    %347 = vmatprep.subr.mxu0 0.0
    %348 = vmatpush1.msra.mxu0 0.0
    %349 = vmatprep.subr.mxu0 0.0
    %350 = vmatpush1.msra.mxu0 0.0
    %351 = vmatprep.subr.mxu0 0.0
    %352 = vmatpush1.msra.mxu0 0.0
    %353 = vmatprep.subr.mxu0 0.0
    %354 = vmatpush1.msra.mxu0 0.0
    %355 = vmatprep.subr.mxu0 0.0
    %356 = vmatpush1.msra.mxu0 0.0
    %357 = vmatprep.subr.mxu0 0.0
    %358 = vmatpush1.msra.mxu0 0.0
    %359 = vmatprep.subr.mxu0 0.0
    %360 = vmatpush1.msra.mxu0 0.0
    %361 = vmatprep.subr.mxu0 0.0
    %362 = vmatpush1.msra.mxu0 0.0
    %363 = vmatprep.subr.mxu0 0.0
    %364 = vmatpush1.msra.mxu0 0.0
    %365 = vmatprep.subr.mxu0 0.0
    %366 = vmatpush1.msra.mxu0 0.0
    %367 = vmatprep.subr.mxu0 0.0
    %368 = vmatpush1.msra.mxu0 0.0
    %369 = vmatprep.subr.mxu0 0.0
    %370 = vmatpush1.msra.mxu0 0.0
    %371 = vmatprep.subr.mxu0 0.0
    %372 = vmatpush1.msra.mxu0 0.0
    %373 = vmatprep.subr.mxu0 0.0
    %374 = vmatpush1.msra.mxu0 0.0
    %375 = vmatprep.subr.mxu0 0.0
    %376 = vmatpush1.msra.mxu0 0.0
    %377 = vmatprep.subr.mxu0 0.0
    %378 = vmatpush1.msra.mxu0 0.0
    %379 = vmatprep.subr.mxu0 0.0
    %380 = vmatpush1.msra.mxu0 0.0
    %381 = vmatprep.subr.mxu0 0.0
    %382 = vmatpush1.msra.mxu0 0.0
    %383 = vmatprep.subr.mxu0 0.0
    %384 = vmatpush1.msra.mxu0 0.0
    %385 = vmatprep.subr.mxu0 0.0
    %386 = vmatpush1.msra.mxu0 0.0
    %387 = vmatprep.subr.mxu0 0.0
    %388 = vmatpush1.msra.mxu0 0.0
    %389 = vmatprep.subr.mxu0 0.0
    %390 = vmatpush1.msra.mxu0 0.0
    %391 = vmatprep.subr.mxu0 0.0
    %392 = vmatpush1.msra.mxu0 0.0
    %393 = vmatprep.subr.mxu0 0.0
    %394 = vmatpush1.msra.mxu0 0.0
    %395 = vmatprep.subr.mxu0 0.0
    %396 = vmatpush1.msra.mxu0 0.0
    %397 = vmatprep.subr.mxu0 0.0
    %398 = vmatpush1.msra.mxu0 0.0
    %399 = vmatprep.mubr.f32.mxu0 0.0
    %400 = vmatmul.mubr.f32.gmra.mrb[0].mxu0 %v330
    %v401 = vpop.f32.mrb[0].mxu0
    %v402 = vadd.f32 0.0, %v401
    %v403 = vpop.f32.mrb[0].mxu0
    %404 = vmatprep.mubr.f32.mxu0 0.0
    %405 = vmatmul.mubr.f32.gmra.mrb[0].mxu0 %v333
    %v406 = vpop.f32.mrb[0].mxu0
    %v407 = vadd.f32 0.0, %v406
    %v408 = vpop.f32.mrb[0].mxu0
    %409 = vdwg.mxu0
    %v410 = vmul.f32 %v324, %v402
    %v411 = vmul.f32 %v325, %v407
    %v412 = vadd.f32 %v410, %v411
    %v413 = vrot.slane %v412, 4
    %v414 = vadd.f32 %v412, %v413
    %v415 = vrot.slane %v414, 2
    %v416 = vadd.f32 %v414, %v415
    %v417 = vrot.slane %v416, 1
    %v418 = vadd.f32 %v416, %v417
    %419 = vst [vmem:[#allocation8] sm:$0x1] %v418
    // Predicated region
    $region26: #{tpu_custom_call.1} parent=1 // pred_check
      _
    $region27: #{tpu_custom_call.1} parent=1 // pred_check_branch
      %421 = sbr.rel (0) target = $region29
    $region28: #{tpu_custom_call.1} parent=1 // pred_region
      %s423 = ssub.s32 16, 16
      %424 = vsyncadd [#allocation4], %s423
      %s426 = sshll.u32 [#allocation8], 4
      %s427 = int_to_ptr.vmem [resolvable:$true] %s426
      %429 = dma.vmem_to_hbm [thread:$0]  %s427, 16, %s3, [#allocation4]
    $region29: #{tpu_custom_call.1} parent=1 // pred_fallthru
      _
    // Predicated region
    $region30: #{tpu_custom_call.1} parent=1 // pred_check
      _
    $region31: #{tpu_custom_call.1} parent=1 // pred_check_branch
      %431 = sbr.rel (0) target = $region33
    $region32: #{tpu_custom_call.1} parent=1 // pred_region
      %432 = dma.done [#allocation4], 16
    $region33: #{tpu_custom_call.1} parent=1 // pred_fallthru
      _
    %433 = vsyncpa [#allocation3], 1
    %434 = vsyncpa [#allocation6], 1
    %435 = vsyncpa [#allocation4], 1

</llo_original>
